<compile_context>
chip_gen: v7x
topology: tpu7x:2x2x1
jax: 0.10.0
libtpu: 0.0.40
codegen_flags: <defaults>
</compile_context>

<pallas_src>
import functools
import math

import jax
import jax.numpy as jnp
import numpy as np
from jax.experimental import pallas as pl
from jax.experimental.pallas import tpu as pltpu


# ---------------------------------------------------------------------------
# Static geometry (host-side numpy): sampling grid (== the registered buffer
# in RV2BEV.__init__) and its bilinear 4-corner decomposition.
# ---------------------------------------------------------------------------
def make_grid_np(rv_size, bev_size, sensor_h=1.73, max_range=50.0,
                 fov_h=(-math.pi, math.pi),
                 fov_v=(-25 * math.pi / 180, 3 * math.pi / 180),
                 range_xy=(-50.0, 50.0, -50.0, 50.0)):
    H_r, W_r = rv_size
    H_b, W_b = bev_size
    xmin, xmax, ymin, ymax = range_xy
    ii, jj = np.meshgrid(np.arange(H_b, dtype=np.float32),
                         np.arange(W_b, dtype=np.float32), indexing="ij")
    x = xmin + jj / (W_b - 1) * (xmax - xmin)
    y = ymax - ii / (H_b - 1) * (ymax - ymin)
    theta = np.arctan2(y, x)
    dist_xy = np.maximum(np.sqrt(x * x + y * y), 0.001)
    phi = np.arctan2(-np.full_like(dist_xy, sensor_h), dist_xy)
    col = (theta - fov_h[0]) / (fov_h[1] - fov_h[0]) * (W_r - 1)
    row = (fov_v[1] - phi) / (fov_v[1] - fov_v[0]) * (H_r - 1)
    mask = (dist_xy > max_range) | (phi < fov_v[0]) | (phi > fov_v[1])
    col = np.where(mask, -2.0, col)
    row = np.where(mask, -2.0, row)
    grid_x = 2 * col / (W_r - 1) - 1
    grid_y = 2 * row / (H_r - 1) - 1
    return np.stack((grid_x, grid_y), axis=-1).astype(np.float32)  # (H_b,W_b,2)


def build_sampling_table_np(grid, rv_size):
    """grid (H_b,W_b,2) -> corner flat indices (N_b,4) int, weights (N_b,4) f32."""
    H_r, W_r = rv_size
    gx = grid[..., 0].reshape(-1).astype(np.float32)
    gy = grid[..., 1].reshape(-1).astype(np.float32)
    ix = (gx + 1.0) * 0.5 * (W_r - 1)       # align_corners=True unnormalization
    iy = (gy + 1.0) * 0.5 * (H_r - 1)
    x0 = np.floor(ix).astype(np.int64)
    y0 = np.floor(iy).astype(np.int64)
    x1, y1 = x0 + 1, y0 + 1
    wx1 = ix - x0
    wx0 = 1.0 - wx1
    wy1 = iy - y0
    wy0 = 1.0 - wy1

    xs = (x0, x1, x0, x1)
    ys = (y0, y0, y1, y1)
    ws = (wx0 * wy0, wx1 * wy0, wx0 * wy1, wx1 * wy1)

    idx_cols, w_cols = [], []
    for xc, yc, wc in zip(xs, ys, ws):
        valid = (xc >= 0) & (xc < W_r) & (yc >= 0) & (yc < H_r)
        xcl = np.clip(xc, 0, W_r - 1)
        ycl = np.clip(yc, 0, H_r - 1)
        idx_cols.append(ycl * W_r + xcl)
        w_cols.append(np.where(valid, wc, 0.0).astype(np.float32))  # zeros pad
    return np.stack(idx_cols, axis=-1), np.stack(w_cols, axis=-1)   # (N_b,4) x2


@functools.lru_cache(maxsize=None)
def _build_sampling(rv_size, bev_size, sensor_h, max_range, fov_h, fov_v,
                    range_xy, t, kt, n_tb, n_r_pad, compute_dtype):
    """Dense padded S^T (already in compute_dtype) + block-sparsity tables."""
    H_r, W_r = rv_size
    n_b = bev_size[0] * bev_size[1]
    n_b_pad = n_tb * t

    grid = make_grid_np(rv_size, bev_size, sensor_h, max_range,
                        fov_h, fov_v, range_xy)
    idx, wgt = build_sampling_table_np(grid, rv_size)             # (N_b, 4)

    # Dense S^T (N_r_pad, N_b_pad): column p = bilinear weights of BEV pixel p.
    s = np.zeros((n_r_pad, n_b_pad), np.float32)
    cols = np.broadcast_to(np.arange(n_b)[:, None], idx.shape)
    np.add.at(s, (idx.reshape(-1), cols.reshape(-1)), wgt.reshape(-1))

    # Per-BEV-tile nonzero K-block ids + counts (the block-sparse schedule).
    kb_lists = []
    for i in range(n_tb):
        lo, hi = i * t, min((i + 1) * t, n_b)
        if lo >= n_b:                       # tile fully in the N_b padding
            kb_lists.append(np.zeros((0,), np.int64))
            continue
        rows = idx[lo:hi][wgt[lo:hi] != 0.0]
        kb_lists.append(np.unique(rows // kt))
    counts = np.array([len(l) for l in kb_lists], np.int32)
    n_k = max(1, int(counts.max()))
    kb_ids = np.zeros((n_tb, n_k), np.int32)
    for i, l in enumerate(kb_lists):
        if len(l):
            kb_ids[i, :len(l)] = l
            kb_ids[i, len(l):] = l[-1]      # repeat last id -> padded-step DMA skipped

    s_t = jnp.asarray(s, dtype=compute_dtype)     # cached in compute dtype
    return s_t, jnp.asarray(kb_ids), jnp.asarray(counts), n_k


# ---------------------------------------------------------------------------
# Pallas kernel: block-sparse pipelined matmul with resident f32 accumulator.
# ---------------------------------------------------------------------------
def _rv2bev_kernel(kb_ref, cnt_ref, feat_ref, s_ref, out_ref, acc_ref,
                   *, feat_resident):
    i = pl.program_id(0)          # BEV tile            ("parallel")
    k = pl.program_id(1)          # sparse K step       ("arbitrary")

    @pl.when(k == 0)
    def _init():
        acc_ref[...] = jnp.zeros_like(acc_ref)

    @pl.when(k < cnt_ref[i])      # skip padded (all-zero) K steps
    def _accumulate():
        if feat_resident:
            f = feat_ref[kb_ref[i, k]]      # dynamic leading-dim block select
        else:
            f = feat_ref[0]                 # block already selected by index_map
        acc_ref[...] += jnp.dot(f, s_ref[...],
                                preferred_element_type=jnp.float32)

    @pl.when(k == pl.num_programs(1) - 1)
    def _finalize():
        out_ref[...] = acc_ref[...].astype(out_ref.dtype)


# ---------------------------------------------------------------------------
# Tile planning (generation-aware).
# ---------------------------------------------------------------------------
def _vmem_capacity_bytes():
    try:
        return int(pltpu.get_tpu_info().vmem_capacity_bytes)
    except Exception:
        return 128 * 2**20


def _choose_bev_tile(n_b):
    """Lane-dense output tile T; prefer an even number of tiles (v7x 2 TCs)."""
    t_cap = max(128, -(-n_b // 128) * 128)
    cands = [c for c in (512, 384, 256, 128) if c <= t_cap] or [t_cap]

    def key(t):
        n_tiles = -(-n_b // t)
        pad_frac = (n_tiles * t - n_b) / float(n_tiles * t)
        even = (n_tiles % 2 == 0)
        return (0 if even else 1, 0 if pad_frac <= 0.125 else 1, -t, pad_frac)

    return min(cands, key=key)


def _plan_tiles(bc, n_r, n_b, itemsize, out_itemsize, vmem_cap,
                feat_resident=None):
    if vmem_cap <= 80 * 2**20:               # v7x class: 64 MiB / TensorCore
        vmem_limit_cap, block_budget = 48 * 2**20, 24 * 2**20
    else:                                    # v5e / v6e: 128 MiB
        vmem_limit_cap, block_budget = 100 * 2**20, 36 * 2**20

    t = _choose_bev_tile(n_b)
    n_tb = -(-n_b // t)
    if n_tb >= 3 and n_tb % 2 == 1:
        n_tb += 1                            # even "parallel" split across 2 TCs

    kt_cap = max(128, -(-n_r // 128) * 128)
    ladder = sorted({c for c in (kt_cap, 8192, 4096, 2048, 1024, 512, 256, 128)
                     if 128 <= c <= kt_cap}, reverse=True)

    out_cost = 2 * bc * t * out_itemsize + 4 * bc * t   # dbl-buf out + f32 acc
    options = (True, False) if feat_resident is None else (bool(feat_resident),)

    chosen = None
    for resident in options:
        for kt in ladder:
            n_r_pad = -(-n_r // kt) * kt
            feat_cost = 2 * bc * (n_r_pad if resident else kt) * itemsize
            s_cost = 2 * kt * t * itemsize
            need = feat_cost + s_cost + out_cost
            if need <= block_budget:
                chosen = (kt, n_r_pad, resident, need)
                break
        if chosen is not None:
            break
    if chosen is None:                       # degenerate fallback: smallest tiles
        kt = 128
        n_r_pad = -(-n_r // kt) * kt
        resident = options[-1]
        feat_cost = 2 * bc * (n_r_pad if resident else kt) * itemsize
        chosen = (kt, n_r_pad, resident, feat_cost + 2 * kt * t * itemsize + out_cost)

    kt, n_r_pad, resident, need = chosen
    vmem_limit = int(min(max(2 * need, 32 * 2**20), vmem_limit_cap))
    return t, kt, n_tb, n_r_pad, resident, vmem_limit


# ---------------------------------------------------------------------------
# Wrapper: forward pass of RV2BEV.
# ---------------------------------------------------------------------------
def rv2bev(rv_feat, bev_size, *, sensor_h=1.73, max_range=50.0,
           fov_h=(-math.pi, math.pi),
           fov_v=(-25 * math.pi / 180, 3 * math.pi / 180),
           range_xy=(-50.0, 50.0, -50.0, 50.0),
           compute_dtype=jnp.bfloat16,      # bf16 operands, f32 MXU accumulation
           feat_resident=None):             # None = auto by VMEM budget
    B, C, H_r, W_r = rv_feat.shape
    H_b, W_b = bev_size
    N_r, N_b, BC = H_r * W_r, H_b * W_b, B * C

    cdt = jnp.dtype(compute_dtype)
    out_dtype = rv_feat.dtype

    T, Kt, n_tb, n_r_pad, resident, vmem_limit = _plan_tiles(
        BC, N_r, N_b, cdt.itemsize, jnp.dtype(out_dtype).itemsize,
        _vmem_capacity_bytes(), feat_resident)
    n_kb = n_r_pad // Kt
    n_b_pad = n_tb * T

    s_t, kb_ids, counts, n_k = _build_sampling(
        (H_r, W_r), (H_b, W_b), float(sensor_h), float(max_range),
        tuple(float(v) for v in fov_h), tuple(float(v) for v in fov_v),
        tuple(float(v) for v in range_xy), T, Kt, n_tb, n_r_pad, cdt)

    # NCHW -> (BC, N_r) is a pure reshape; the (n_kb, BC, Kt) re-layout is one
    # cheap pass over the *small* operand so the K-block index becomes the
    # leading (untiled) axis for dynamic selection inside the kernel.
    feat = rv_feat.reshape(BC, N_r).astype(cdt)
    if n_r_pad != N_r:
        feat = jnp.pad(feat, ((0, 0), (0, n_r_pad - N_r)))
    feat3 = feat.reshape(BC, n_kb, Kt).transpose(1, 0, 2)      # (n_kb, BC, Kt)

    if resident:
        # Whole feat resident in VMEM (constant index map -> DMA'd once).
        feat_spec = pl.BlockSpec((n_kb, BC, Kt), lambda i, k, kb, cnt: (0, 0, 0))
    else:
        # Stream only the nonzero K-block for this (i, k).
        feat_spec = pl.BlockSpec((1, BC, Kt),
                                 lambda i, k, kb, cnt: (kb[i, k], 0, 0))

    kernel = functools.partial(_rv2bev_kernel, feat_resident=resident)

    out_t = pl.pallas_call(
        kernel,
        out_shape=jax.ShapeDtypeStruct((BC, n_b_pad), out_dtype),
        grid_spec=pltpu.PrefetchScalarGridSpec(
            num_scalar_prefetch=2,                 # kb_ids, counts -> SMEM
            grid=(n_tb, n_k),
            in_specs=[
                feat_spec,
                pl.BlockSpec((Kt, T), lambda i, k, kb, cnt: (kb[i, k], i)),
            ],
            out_specs=pl.BlockSpec((BC, T), lambda i, k, kb, cnt: (0, i)),
            scratch_shapes=[pltpu.VMEM((BC, T), jnp.float32)],
        ),
        compiler_params=pltpu.CompilerParams(
            dimension_semantics=("parallel", "arbitrary"),
            vmem_limit_bytes=vmem_limit,
        ),
    )(kb_ids, counts, feat3, s_t)

    if n_b_pad != N_b:
        out_t = out_t[:, :N_b]
    # (BC, N_b) -> (B, C, H_b, W_b): pure reshape, already in rv_feat.dtype.
    return out_t.reshape(B, C, H_b, W_b)


# ---------------------------------------------------------------------------
# Pure-JAX reference (F.grid_sample, bilinear / zeros / align_corners=True).
# ---------------------------------------------------------------------------
def grid_sample_ref(feat, grid):
    B, C, H, W = feat.shape
    gx, gy = grid[..., 0], grid[..., 1]
    ix = (gx + 1.0) * 0.5 * (W - 1)
    iy = (gy + 1.0) * 0.5 * (H - 1)
    x0 = jnp.floor(ix).astype(jnp.int32)
    y0 = jnp.floor(iy).astype(jnp.int32)
    x1, y1 = x0 + 1, y0 + 1
    wx1 = ix - x0
    wx0 = 1.0 - wx1
    wy1 = iy - y0
    wy0 = 1.0 - wy1

    def gather(xi, yi):
        valid = (xi >= 0) & (xi < W) & (yi >= 0) & (yi < H)
        xc = jnp.clip(xi, 0, W - 1)
        yc = jnp.clip(yi, 0, H - 1)
        return feat[:, :, yc, xc] * valid.astype(feat.dtype)

    return (gather(x0, y0) * (wx0 * wy0)
            + gather(x1, y0) * (wx1 * wy0)
            + gather(x0, y1) * (wx0 * wy1)
            + gather(x1, y1) * (wx1 * wy1))


if __name__ == "__main__":
    B, C = 2, 4
    H_r, W_r = 8, 16          # range-view feature map
    H_b, W_b = 16, 16         # BEV output

    key = jax.random.PRNGKey(0)
    rv_feat = jax.random.normal(key, (B, C, H_r, W_r), dtype=jnp.float32)

    grid = jnp.asarray(make_grid_np((H_r, W_r), (H_b, W_b)))
    ref = jax.block_until_ready(grid_sample_ref(rv_feat, grid))

    # 1) f32 path (bit-tight against the bilinear reference).
    out_f32 = jax.block_until_ready(
        rv2bev(rv_feat, (H_b, W_b), compute_dtype=jnp.float32))
    np.testing.assert_allclose(np.asarray(out_f32), np.asarray(ref),
                               rtol=1e-5, atol=1e-5)

    # 2) f32 path with the pipelined (non-resident) feat variant.
    out_stream = jax.block_until_ready(
        rv2bev(rv_feat, (H_b, W_b), compute_dtype=jnp.float32,
               feat_resident=False))
    np.testing.assert_allclose(np.asarray(out_stream), np.asarray(ref),
                               rtol=1e-5, atol=1e-5)

    # 3) default bandwidth-optimized path (bf16 operands, f32 accumulation).
    out_bf16 = jax.block_until_ready(rv2bev(rv_feat, (H_b, W_b)))
    assert out_bf16.shape == (B, C, H_b, W_b)
    np.testing.assert_allclose(np.asarray(out_bf16), np.asarray(ref),
                               rtol=5e-2, atol=5e-2)

    print("KERNEL_OK")
</pallas_src>

<mosaic_0001>
module attributes {stable_mosaic.version = 11 : i64} {
  func.func @_rv2bev_kernel(%arg0: i32, %arg1: i32, %arg2: memref<2x1xi32, #tpu.memory_space<smem>>, %arg3: memref<2xi32, #tpu.memory_space<smem>>, %arg4: memref<1x8x128xf32, #tpu.memory_space<vmem>>, %arg5: memref<128x128xf32, #tpu.memory_space<vmem>>, %arg6: memref<8x128xf32, #tpu.memory_space<vmem>>, %arg7: memref<8x128xf32, #tpu.memory_space<vmem>>) attributes {dimension_semantics = [#tpu.dimension_semantics<parallel>, #tpu.dimension_semantics<arbitrary>], iteration_bounds = array<i64: 2, 1>, scalar_prefetch = 2 : i64, scratch_operands = 1 : i64, tpu.core_type = #tpu.core_type<tc>, window_params = [{pipeline_mode = #tpu.pipeline_mode<synchronous>, transform_indices = @transform_0, window_bounds = array<i64: 1, 8, 128>}, {transform_indices = @transform_1, window_bounds = array<i64: 128, 128>}, {transform_indices = @transform_2, window_bounds = array<i64: 8, 128>}]} {
    %c0_i32 = arith.constant 0 : i32
    %0 = arith.cmpi eq, %arg1, %c0_i32 : i32
    %1 = arith.extui %0 : i1 to i32
    %c0_i32_0 = arith.constant 0 : i32
    %2 = arith.cmpi ne, %1, %c0_i32_0 : i32
    scf.if %2 {
      %cst = arith.constant 0.000000e+00 : f32
      %11 = vector.broadcast %cst : f32 to vector<8x128xf32>
      %c0 = arith.constant 0 : index
      %c0_4 = arith.constant 0 : index
      %12 = vector.load %arg7[%c0, %c0_4] : memref<8x128xf32, #tpu.memory_space<vmem>>, vector<8x128xf32>
      tpu.vector_store %arg7[%c0, %c0_4], %11 {strides = array<i32>} : memref<8x128xf32, #tpu.memory_space<vmem>>, vector<8x128xf32>,
    } else {
    }
    %3 = arith.index_cast %arg0 : i32 to index
    %4 = memref.load %arg3[%3] : memref<2xi32, #tpu.memory_space<smem>>
    %5 = arith.cmpi slt, %arg1, %4 : i32
    %6 = arith.extui %5 : i1 to i32
    %c0_i32_1 = arith.constant 0 : i32
    %7 = arith.cmpi ne, %6, %c0_i32_1 : i32
    scf.if %7 {
      %11 = arith.index_cast %arg0 : i32 to index
      %12 = arith.index_cast %arg1 : i32 to index
      %13 = memref.load %arg2[%11, %12] : memref<2x1xi32, #tpu.memory_space<smem>>
      %14 = arith.index_cast %13 : i32 to index
      %c0 = arith.constant 0 : index
      %c0_4 = arith.constant 0 : index
      %15 = vector.load %arg4[%14, %c0, %c0_4] : memref<1x8x128xf32, #tpu.memory_space<vmem>>, vector<1x8x128xf32>
      %16 = vector.shape_cast %15 : vector<1x8x128xf32> to vector<8x128xf32>
      %c0_5 = arith.constant 0 : index
      %c0_6 = arith.constant 0 : index
      %17 = vector.load %arg7[%c0_5, %c0_6] : memref<8x128xf32, #tpu.memory_space<vmem>>, vector<8x128xf32>
      %c0_7 = arith.constant 0 : index
      %c0_8 = arith.constant 0 : index
      %18 = vector.load %arg5[%c0_7, %c0_8] : memref<128x128xf32, #tpu.memory_space<vmem>>, vector<128x128xf32>
      %cst = arith.constant dense<0.000000e+00> : vector<8x128xf32>
      %19 = tpu.matmul %16, %18, %cst {dimension_numbers = #tpu.dot_dimension_numbers<[1], [0], [0], [1], [0, 0, 1, 1], [], []>} : vector<8x128xf32>, vector<128x128xf32>, vector<8x128xf32> -> vector<8x128xf32>
      %20 = arith.addf %17, %19 : vector<8x128xf32>
      %c0_9 = arith.constant 0 : index
      %c0_10 = arith.constant 0 : index
      %21 = vector.load %arg7[%c0_9, %c0_10] : memref<8x128xf32, #tpu.memory_space<vmem>>, vector<8x128xf32>
      tpu.vector_store %arg7[%c0_9, %c0_10], %20 {strides = array<i32>} : memref<8x128xf32, #tpu.memory_space<vmem>>, vector<8x128xf32>,
    } else {
    }
    %c0_i32_2 = arith.constant 0 : i32
    %8 = arith.cmpi eq, %arg1, %c0_i32_2 : i32
    %9 = arith.extui %8 : i1 to i32
    %c0_i32_3 = arith.constant 0 : i32
    %10 = arith.cmpi ne, %9, %c0_i32_3 : i32
    scf.if %10 {
      %c0 = arith.constant 0 : index
      %c0_4 = arith.constant 0 : index
      %11 = vector.load %arg7[%c0, %c0_4] : memref<8x128xf32, #tpu.memory_space<vmem>>, vector<8x128xf32>
      %c0_5 = arith.constant 0 : index
      %c0_6 = arith.constant 0 : index
      %12 = vector.load %arg6[%c0_5, %c0_6] : memref<8x128xf32, #tpu.memory_space<vmem>>, vector<8x128xf32>
      tpu.vector_store %arg6[%c0_5, %c0_6], %11 {strides = array<i32>} : memref<8x128xf32, #tpu.memory_space<vmem>>, vector<8x128xf32>,
    } else {
    }
    return
  }
  func.func @transform_0(%arg0: i32, %arg1: i32, %arg2: memref<2x1xi32, #tpu.memory_space<smem>>, %arg3: memref<2xi32, #tpu.memory_space<smem>>) -> (i32, i32, i32) {
    %c0_i32 = arith.constant 0 : i32
    %c0_i32_0 = arith.constant 0 : i32
    %c0_i32_1 = arith.constant 0 : i32
    %c0_i32_2 = arith.constant 0 : i32
    return %c0_i32, %c0_i32_0, %c0_i32_1 : i32, i32, i32
  }
  func.func @transform_1(%arg0: i32, %arg1: i32, %arg2: memref<2x1xi32, #tpu.memory_space<smem>>, %arg3: memref<2xi32, #tpu.memory_space<smem>>) -> (i32, i32) {
    %0 = arith.index_cast %arg0 : i32 to index
    %1 = arith.index_cast %arg1 : i32 to index
    %2 = memref.load %arg2[%0, %1] : memref<2x1xi32, #tpu.memory_space<smem>>
    %c0_i32 = arith.constant 0 : i32
    return %2, %arg0 : i32, i32
  }
  func.func @transform_2(%arg0: i32, %arg1: i32, %arg2: memref<2x1xi32, #tpu.memory_space<smem>>, %arg3: memref<2xi32, #tpu.memory_space<smem>>) -> (i32, i32) {
    %c0_i32 = arith.constant 0 : i32
    %c0_i32_0 = arith.constant 0 : i32
    return %c0_i32, %arg0 : i32, i32
  }
}

</mosaic_0001>

<llo_original>
// kernel: tpu_custom_call.1
$region0: #{tpu_custom_call.1}
  #allocation0 [shape = 'u32[]', space=smem, size = 0x4, offset = 0x4, fixed_abs, tag = 'smem constant byte address 0x4 - core index']
  #allocation1 [shape = 'u32[144,128]{1,0:T(1,128)}', space=vmem, size = 0x12000, scoped, tag = 'internal scratch']
  #allocation2 [shape = 'f32[8,128]{1,0:T(8,128)}', space=vmem, size = 0x1000, scoped, tag = 'scratch operand']
  #allocation3 [shape = 's32[1]{0}', space=sflag, size = 0x4, scoped, tag = 'scoped memory for tpu_custom_call.1']
  #allocation4 [shape = 'u8[1024]{0}', space=smem, size = 0x400, scoped, tag = 'prefetched SMEM operand 0']
  #allocation5 [shape = 'u8[512]{0}', space=smem, size = 0x200, scoped, tag = 'prefetched SMEM operand 1']
  %s0 = inlined_call_operand.vmem [shape: s32[2,1], index: 0, kind: input, shape index: {}]
  %s1 = inlined_call_operand.vmem [shape: s32[2], index: 1, kind: input, shape index: {}]
  %s2 = inlined_call_operand.vmem [shape: f32[1,8,128], index: 2, kind: input, shape index: {}]
  %s3 = inlined_call_operand.hbm [shape: f32[128,256], index: 3, kind: input, shape index: {}]
  %s4 = inlined_call_operand.hbm [shape: f32[8,256], index: 4, kind: output, shape index: {}]
  %s5 = sld [smem:[#allocation0]]
  $region57: #{tpu_custom_call.1} parent=0
    _
  %s7 = ssub.s32 1, %s5
  %s8 = scalar_select 0, %s7, %s5
  %s9 = sshll.u32 %s0, 4
  %s10 = int_to_ptr.vmem [resolvable:$true] %s9
  %12 = dma.vmem_to_smem %s10, 32, [#allocation4], [#allocation3]
  %s13 = sshll.u32 %s1, 4
  %s14 = int_to_ptr.vmem [resolvable:$true] %s13
  %16 = dma.vmem_to_smem %s14, 16, [#allocation5], [#allocation3]
  %17 = dma.done [#allocation3], 48
  %18 = sfence
  $region1: #{tpu_custom_call.1} parent=0
    #allocation6 [shape = 'u8[131072]{0}', space=vmem, size = 0x20000, scoped, tag = 'input window, operand 3']
    #allocation7 [shape = 's32[2]{0}', space=sflag, size = 0x8, scoped, tag = 'scoped memory for tpu_custom_call.1']
    #allocation8 [shape = 's32[2]{0}', space=sflag, size = 0x8, scoped, tag = 'scoped memory for tpu_custom_call.1']
    #allocation9 [shape = 'u8[8192]{0}', space=vmem, size = 0x2000, scoped, tag = 'output window, operand 0']
    %19 = vsyncpa [#allocation7], 0
    %s20 = scalar_lea.sflag [#allocation7], 1
    %21 = vsyncpa %s20, 0
    %22 = vsyncpa [#allocation8], 0
    %s23 = scalar_lea.sflag [#allocation8], 1
    %24 = vsyncpa %s23, 0
    loop: start=0, step=1, limit=4
    $region2: #{tpu_custom_call.1} parent=1 // loop_pre_header
      _
    $region3: #{tpu_custom_call.1} parent=1 // loop_header
      %s26 = sphi 0, %s30
      %p27 = scmp.ge.s32.totalorder %s26, 4
      %s33 = sphi 0, %s45
      %s34 = sphi 0, %s41
      %s35 = sphi 0, %s33
      %s36 = sphi 0, %s34
      %s37 = sphi 0, %s35
      %s38 = sphi 0, %s36
      %s46 = sphi 0, %s46
      %s48 = sphi 0, %s46
      %s49 = sphi 0, %s48
      %s63 = sphi 0, %s49
      %s87 = sphi 0, %s89
      %s90 = sphi 0, %s87
      %s91 = sphi 0, %s90
      %s107 = sphi 0, %s91
      %s113 = sphi 0, %s115
      %s116 = sphi 0, %s113
      %s117 = sphi 0, %s116
      %s133 = sphi 0, %s117
    $region4: #{tpu_custom_call.1} parent=1 // loop_header_branch
      %29 = sbr.rel (%p27) target = $region8
    $region5: #{tpu_custom_call.1} parent=1 // loop_body
      %s31 = ssub.s32 %s26, 1
      %s32 = ssub.s32 %s26, 2
      %s39 = sadd.s32 1, %s34
      %p40 = scmp.ge.s32.totalorder %s39, 1
      %s41 = scalar_select %p40, 0, %s39
      %s42 = sadd.s32 1, %s33
      %s43 = scalar_select %p40, %s42, %s33
      %p44 = scmp.ge.s32.totalorder %s43, 2
      %s45 = scalar_select %p44, 0, %s43
      %s47 = sadd.s32 %s46, 1
      %p50 = scmp.eq.s32.totalorder %s26, 1
      %p51 = scmp.ne.s32.totalorder %s46, %s48
      %p52 = scmp.eq.s32.totalorder %s26, 0
      %p53 = por %p51, %p52
      %p54 = scmp.ne.s32.totalorder %s46, %s48
      %p55 = scmp.eq.s32.totalorder %s31, 1
      %p56 = por %p54, %p55
      %p57 = scmp.ne.s32.totalorder %s48, %s49
      %p58 = scmp.eq.s32.totalorder %s31, 0
      %p59 = por %p57, %p58
      %p60 = scmp.ne.s32.totalorder %s48, %s49
      %p61 = scmp.eq.s32.totalorder %s32, 1
      %p62 = por %p60, %p61
      %p64 = scmp.ne.s32.totalorder %s49, %s63
      %p65 = scmp.eq.s32.totalorder %s32, 0
      %p66 = por %p64, %p65
      %s67 = sshra.s32 %s34, 7
      %s68 = sand.u32 %s34, 127
      %s69 = sadd.s32 %s67, %s33
      %s70 = smul.u32 %s69, 128
      %s71 = sshra.s32 %s34, 7
      %s72 = sand.u32 %s34, 127
      %s73 = sadd.s32 %s70, %s72
      %s74 = sld [smem:[#allocation4 + %s73]]
      %s75 = sshra.s32 %s41, 7
      %s76 = sand.u32 %s41, 127
      %s77 = sadd.s32 %s75, %s45
      %s78 = smul.u32 %s77, 128
      %s79 = sshra.s32 %s41, 7
      %s80 = sand.u32 %s41, 127
      %s81 = sadd.s32 %s78, %s80
      %s82 = sld [smem:[#allocation4 + %s81]]
      %s83 = ssub.s32 %s74, %s82
      %s84 = ssub.s32 %s33, %s45
      %s85 = sor.u32 %s83, %s84
      %p86 = scmp.eq.s32.totalorder %s85, 0
      %s88 = sadd.s32 %s87, 1
      %s89 = scalar_select %p86, %s87, %s88
      %p92 = pneg %p86
      %p93 = scmp.eq.s32.totalorder %s26, 1
      %p94 = por %p92, %p93
      %p95 = scmp.ne.s32.totalorder %s87, %s90
      %p96 = scmp.eq.s32.totalorder %s26, 0
      %p97 = por %p95, %p96
      %p98 = scmp.ne.s32.totalorder %s87, %s90
      %p99 = scmp.eq.s32.totalorder %s31, 1
      %p100 = por %p98, %p99
      %p101 = scmp.ne.s32.totalorder %s90, %s91
      %p102 = scmp.eq.s32.totalorder %s31, 0
      %p103 = por %p101, %p102
      %p104 = scmp.ne.s32.totalorder %s90, %s91
      %p105 = scmp.eq.s32.totalorder %s32, 1
      %p106 = por %p104, %p105
      %p108 = scmp.ne.s32.totalorder %s91, %s107
      %p109 = scmp.eq.s32.totalorder %s32, 0
      %p110 = por %p108, %p109
      %s111 = ssub.s32 %s33, %s45
      %p112 = scmp.eq.s32.totalorder %s111, 0
      %s114 = sadd.s32 %s113, 1
      %s115 = scalar_select %p112, %s113, %s114
      %p118 = pneg %p112
      %p119 = scmp.eq.s32.totalorder %s26, 1
      %p120 = por %p118, %p119
      %p121 = scmp.ne.s32.totalorder %s113, %s116
      %p122 = scmp.eq.s32.totalorder %s26, 0
      %p123 = por %p121, %p122
      %p124 = scmp.ne.s32.totalorder %s113, %s116
      %p125 = scmp.eq.s32.totalorder %s31, 1
      %p126 = por %p124, %p125
      %p127 = scmp.ne.s32.totalorder %s116, %s117
      %p128 = scmp.eq.s32.totalorder %s31, 0
      %p129 = por %p127, %p128
      %p130 = scmp.ne.s32.totalorder %s116, %s117
      %p131 = scmp.eq.s32.totalorder %s32, 1
      %p132 = por %p130, %p131
      %p134 = scmp.ne.s32.totalorder %s117, %s133
      %p135 = scmp.eq.s32.totalorder %s32, 0
      %p136 = por %p134, %p135
      %p137 = scmp.le.s32.totalorder 1, %s26
      %p138 = scmp.lt.s32.totalorder %s26, 3
      %p139 = pnand %p137, %p138
      %p140 = pneg %p139
      // Predicated region
      $region9: #{tpu_custom_call.1} parent=5 // pred_check
        _
      $region10: #{tpu_custom_call.1} parent=5 // pred_check_branch
        %142 = sbr.rel (%p139) target = $region12
      $region11: #{tpu_custom_call.1} parent=5 // pred_region
        %s143 = ssub.s32 %s26, 1
        // Predicated region
        $region13: #{tpu_custom_call.1} parent=11 // pred_check
          %p144 = pneg %p59
        $region14: #{tpu_custom_call.1} parent=11 // pred_check_branch
          %146 = sbr.rel (%p144) target = $region16
        $region15: #{tpu_custom_call.1} parent=11 // pred_region
          _
        $region16: #{tpu_custom_call.1} parent=11 // pred_fallthru
          _
      $region12: #{tpu_custom_call.1} parent=5 // pred_fallthru
        _
      %p147 = scmp.lt.s32.totalorder %s26, 2
      // Predicated region
      $region17: #{tpu_custom_call.1} parent=5 // pred_check
        %p148 = pneg %p147
      $region18: #{tpu_custom_call.1} parent=5 // pred_check_branch
        %150 = sbr.rel (%p148) target = $region20
      $region19: #{tpu_custom_call.1} parent=5 // pred_region
        // Predicated region
        $region21: #{tpu_custom_call.1} parent=19 // pred_check
          %p151 = pneg %p97
        $region22: #{tpu_custom_call.1} parent=19 // pred_check_branch
          %153 = sbr.rel (%p151) target = $region24
        $region23: #{tpu_custom_call.1} parent=19 // pred_region
          %s154 = sand.u32 %s87, 1
          %s155 = scalar_lea.sflag [#allocation7], %s154
          %s156 = sand.u32 %s87, 1
          %s157 = smul.addr %s156, 128
          %s158 = scalar_lea.vmem [#allocation6], %s157
          %s159 = sshra.s32 %s34, 7
          %s160 = sand.u32 %s34, 127
          %s161 = sadd.s32 %s159, %s33
          %s162 = smul.u32 %s161, 128
          %s163 = sshra.s32 %s34, 7
          %s164 = sand.u32 %s34, 127
          %s165 = sadd.s32 %s162, %s164
          %s166 = sld [smem:[#allocation4 + %s165]]
          %s167 = smul.u32 16, %s166
          %s169 = ssub.s32 2048, 2048
          %170 = vsyncadd %s155, %s169
          %s171 = smul.addr %s167, 2
          %s172 = sadd.s32 %s33, %s171
          %s173 = smul.addr %s172, 128
          %s174 = scalar_lea.hbm %s3, %s173
          %s175 = sshll.u32 %s158, 4
          %s176 = int_to_ptr.vmem [resolvable:$true] %s175
          %181 = dma.hbm_to_vmem [thread:$0]  %s174, 2048, %s176, %s155, 256, 128, 8
        $region24: #{tpu_custom_call.1} parent=19 // pred_fallthru
          _
      $region20: #{tpu_custom_call.1} parent=5 // pred_fallthru
        _
      %p182 = scmp.le.s32.totalorder 1, %s26
      %p183 = scmp.lt.s32.totalorder %s26, 3
      %p184 = pnand %p182, %p183
      %p185 = pneg %p184
      // Predicated region
      $region25: #{tpu_custom_call.1} parent=5 // pred_check
        _
      $region26: #{tpu_custom_call.1} parent=5 // pred_check_branch
        %187 = sbr.rel (%p184) target = $region28
      $region27: #{tpu_custom_call.1} parent=5 // pred_region
        %s188 = ssub.s32 %s26, 1
        %s189 = sand.u32 %s90, 1
        %s190 = scalar_lea.sflag [#allocation7], %s189
        %s191 = sand.u32 %s90, 1
        %s192 = smul.addr %s191, 128
        %s193 = scalar_lea.vmem [#allocation6], %s192
        // Predicated region
        $region29: #{tpu_custom_call.1} parent=27 // pred_check
          %p194 = pneg %p103
        $region30: #{tpu_custom_call.1} parent=27 // pred_check_branch
          %196 = sbr.rel (%p194) target = $region32
        $region31: #{tpu_custom_call.1} parent=27 // pred_region
          %197 = dma.done %s190, 2048
        $region32: #{tpu_custom_call.1} parent=27 // pred_fallthru
          _
        %p198 = pneg %p59
        %p199 = pneg %p56
        %s200 = sand.u32 %s90, 1
        %s201 = scalar_lea.sflag [#allocation7], %s200
        %s202 = sand.u32 %s90, 1
        %s203 = smul.addr %s202, 128
        %s204 = scalar_lea.vmem [#allocation6], %s203
        %p205 = pneg %p103
        %p206 = pneg %p100
        %p207 = pneg %p129
        %p208 = pneg %p126
        %s209 = sand.u32 %s116, 1
        %s210 = scalar_lea.sflag [#allocation8], %s209
        %s211 = sand.u32 %s116, 1
        %s212 = smul.addr %s211, 8
        %s213 = scalar_lea.vmem [#allocation9], %s212
        %s214 = sshra.s32 %s36, 7
        %s215 = sand.u32 %s36, 127
        %s216 = sadd.s32 %s214, %s35
        %s217 = smul.u32 %s216, 128
        %s218 = sshra.s32 %s36, 7
        %s219 = sand.u32 %s36, 127
        %s220 = sadd.s32 %s217, %s219
        %s221 = sld [smem:[#allocation4 + %s220]]
        %s222 = smul.u32 16, %s221
        %p223 = scmp.eq.s32.totalorder %s36, 0
        // Predicated region
        $region33: #{tpu_custom_call.1} parent=27 // pred_check
          %p224 = pneg %p223
        $region34: #{tpu_custom_call.1} parent=27 // pred_check_branch
          %226 = sbr.rel (%p224) target = $region36
        $region35: #{tpu_custom_call.1} parent=27 // pred_region
          %227 = vst [vmem:[#allocation2] sm:$0xff] 0.0
        $region36: #{tpu_custom_call.1} parent=27 // pred_fallthru
          _
        %s228 = sld [smem:[#allocation5 + %s35]]
        %p229 = scmp.lt.s32.totalorder %s36, %s228
        // Predicated region
        $region37: #{tpu_custom_call.1} parent=27 // pred_check
          %p230 = pneg %p229
        $region38: #{tpu_custom_call.1} parent=27 // pred_check_branch
          %232 = sbr.rel (%p230) target = $region40
        $region39: #{tpu_custom_call.1} parent=27 // pred_region
          %s233 = sshra.s32 %s36, 7
          %s234 = sand.u32 %s36, 127
          %s235 = sadd.s32 %s233, %s35
          %s236 = smul.u32 %s235, 128
          %s237 = sshra.s32 %s36, 7
          %s238 = sand.u32 %s36, 127
          %s239 = sadd.s32 %s236, %s238
          %s240 = sld [smem:[#allocation4 + %s239]]
          %s241 = smul.u32 %s240, 8
          %s242 = scalar_lea.vmem %s2, %s241
          %v243 = vld [vmem:[%s242] sm:$0xff]
          %v244 = vld [vmem:[#allocation2] sm:$0xff]
          %v245 = vld [vmem:[%s193] sm:$0xff]
          %v246 = vld [vmem:[%s193 + $0x8] sm:$0xff]
          %v247 = vld [vmem:[%s193 + $0x10] sm:$0xff]
          %v248 = vld [vmem:[%s193 + $0x18] sm:$0xff]
          %v249 = vld [vmem:[%s193 + $0x20] sm:$0xff]
          %v250 = vld [vmem:[%s193 + $0x28] sm:$0xff]
          %v251 = vld [vmem:[%s193 + $0x30] sm:$0xff]
          %v252 = vld [vmem:[%s193 + $0x38] sm:$0xff]
          %v253 = vld [vmem:[%s193 + $0x40] sm:$0xff]
          %v254 = vld [vmem:[%s193 + $0x48] sm:$0xff]
          %v255 = vld [vmem:[%s193 + $0x50] sm:$0xff]
          %v256 = vld [vmem:[%s193 + $0x58] sm:$0xff]
          %v257 = vld [vmem:[%s193 + $0x60] sm:$0xff]
          %v258 = vld [vmem:[%s193 + $0x68] sm:$0xff]
          %v259 = vld [vmem:[%s193 + $0x70] sm:$0xff]
          %v260 = vld [vmem:[%s193 + $0x78] sm:$0xff]
          %261 = vmatprep.subr.mxu0 0.0
          %262 = vmatpush1.msra.mxu0 %v245
          %263 = vmatprep.subr.mxu0 0.0
          %264 = vmatpush1.msra.mxu0 %v246
          %265 = vmatprep.subr.mxu0 0.0
          %266 = vmatpush1.msra.mxu0 %v247
          %267 = vmatprep.subr.mxu0 0.0
          %268 = vmatpush1.msra.mxu0 %v248
          %269 = vmatprep.subr.mxu0 0.0
          %270 = vmatpush1.msra.mxu0 %v249
          %271 = vmatprep.subr.mxu0 0.0
          %272 = vmatpush1.msra.mxu0 %v250
          %273 = vmatprep.subr.mxu0 0.0
          %274 = vmatpush1.msra.mxu0 %v251
          %275 = vmatprep.subr.mxu0 0.0
          %276 = vmatpush1.msra.mxu0 %v252
          %277 = vmatprep.subr.mxu0 0.0
          %278 = vmatpush1.msra.mxu0 %v253
          %279 = vmatprep.subr.mxu0 0.0
          %280 = vmatpush1.msra.mxu0 %v254
          %281 = vmatprep.subr.mxu0 0.0
          %282 = vmatpush1.msra.mxu0 %v255
          %283 = vmatprep.subr.mxu0 0.0
          %284 = vmatpush1.msra.mxu0 %v256
          %285 = vmatprep.subr.mxu0 0.0
          %286 = vmatpush1.msra.mxu0 %v257
          %287 = vmatprep.subr.mxu0 0.0
          %288 = vmatpush1.msra.mxu0 %v258
          %289 = vmatprep.subr.mxu0 0.0
          %290 = vmatpush1.msra.mxu0 %v259
          %291 = vmatprep.subr.mxu0 0.0
          %292 = vmatpush1.msra.mxu0 %v260
          %293 = vmatprep.subr.mxu0 0.0
          %294 = vmatpush1.msra.mxu0 0.0
          %295 = vmatprep.subr.mxu0 0.0
          %296 = vmatpush1.msra.mxu0 0.0
          %297 = vmatprep.subr.mxu0 0.0
          %298 = vmatpush1.msra.mxu0 0.0
          %299 = vmatprep.subr.mxu0 0.0
          %300 = vmatpush1.msra.mxu0 0.0
          %301 = vmatprep.subr.mxu0 0.0
          %302 = vmatpush1.msra.mxu0 0.0
          %303 = vmatprep.subr.mxu0 0.0
          %304 = vmatpush1.msra.mxu0 0.0
          %305 = vmatprep.subr.mxu0 0.0
          %306 = vmatpush1.msra.mxu0 0.0
          %307 = vmatprep.subr.mxu0 0.0
          %308 = vmatpush1.msra.mxu0 0.0
          %309 = vmatprep.subr.mxu0 0.0
          %310 = vmatpush1.msra.mxu0 0.0
          %311 = vmatprep.subr.mxu0 0.0
          %312 = vmatpush1.msra.mxu0 0.0
          %313 = vmatprep.subr.mxu0 0.0
          %314 = vmatpush1.msra.mxu0 0.0
          %315 = vmatprep.subr.mxu0 0.0
          %316 = vmatpush1.msra.mxu0 0.0
          %317 = vmatprep.subr.mxu0 0.0
          %318 = vmatpush1.msra.mxu0 0.0
          %319 = vmatprep.subr.mxu0 0.0
          %320 = vmatpush1.msra.mxu0 0.0
          %321 = vmatprep.subr.mxu0 0.0
          %322 = vmatpush1.msra.mxu0 0.0
          %323 = vmatprep.subr.mxu0 0.0
          %324 = vmatpush1.msra.mxu0 0.0
          %325 = vmatprep.mubr.f32.mxu0 0.0
          %326 = vmatmul.mubr.f32.gmra.mrb[0].mxu0 %v243
          %v327 = vpop.f32.mrb[0].mxu0
          %v328 = vadd.f32 0.0, %v327
          %v329 = vpop.f32.mrb[0].mxu0
          %330 = vdwg.mxu0
          %v331 = vadd.f32 %v244, %v328
          %332 = vst [vmem:[#allocation2] sm:$0xff] %v331
        $region40: #{tpu_custom_call.1} parent=27 // pred_fallthru
          _
        // Predicated region
        $region41: #{tpu_custom_call.1} parent=27 // pred_check
          %p333 = pneg %p223
        $region42: #{tpu_custom_call.1} parent=27 // pred_check_branch
          %335 = sbr.rel (%p333) target = $region44
        $region43: #{tpu_custom_call.1} parent=27 // pred_region
          %v336 = vld [vmem:[#allocation2] sm:$0xff]
          %337 = vst [vmem:[%s213] sm:$0xff] %v336
        $region44: #{tpu_custom_call.1} parent=27 // pred_fallthru
          _
        %s338 = sand.u32 %s116, 1
        %s339 = scalar_lea.sflag [#allocation8], %s338
        %s340 = sand.u32 %s116, 1
        %s341 = smul.addr %s340, 8
        %s342 = scalar_lea.vmem [#allocation9], %s341
        // Predicated region
        $region45: #{tpu_custom_call.1} parent=27 // pred_check
          %p343 = pneg %p126
        $region46: #{tpu_custom_call.1} parent=27 // pred_check_branch
          %345 = sbr.rel (%p343) target = $region48
        $region47: #{tpu_custom_call.1} parent=27 // pred_region
          %s347 = ssub.s32 128, 128
          %348 = vsyncadd %s339, %s347
          %s349 = smul.addr %s35, 128
          %s350 = scalar_lea.hbm %s4, %s349
          %s352 = sshll.u32 %s342, 4
          %s353 = int_to_ptr.vmem [resolvable:$true] %s352
          %355 = dma.vmem_to_hbm [thread:$0]  %s353, 128, %s350, %s339
        $region48: #{tpu_custom_call.1} parent=27 // pred_fallthru
          _
      $region28: #{tpu_custom_call.1} parent=5 // pred_fallthru
        _
      %p356 = scmp.le.s32.totalorder 2, %s26
      // Predicated region
      $region49: #{tpu_custom_call.1} parent=5 // pred_check
        %p357 = pneg %p356
      $region50: #{tpu_custom_call.1} parent=5 // pred_check_branch
        %359 = sbr.rel (%p357) target = $region52
      $region51: #{tpu_custom_call.1} parent=5 // pred_region
        %s360 = ssub.s32 %s26, 2
        // Predicated region
        $region53: #{tpu_custom_call.1} parent=51 // pred_check
          %p361 = pneg %p132
        $region54: #{tpu_custom_call.1} parent=51 // pred_check_branch
          %363 = sbr.rel (%p361) target = $region56
        $region55: #{tpu_custom_call.1} parent=51 // pred_region
          %s364 = sand.u32 %s117, 1
          %s365 = scalar_lea.sflag [#allocation8], %s364
          %s366 = sand.u32 %s117, 1
          %s367 = smul.addr %s366, 8
          %s368 = scalar_lea.vmem [#allocation9], %s367
          %369 = dma.done %s365, 128
        $region56: #{tpu_custom_call.1} parent=51 // pred_fallthru
          _
      $region52: #{tpu_custom_call.1} parent=5 // pred_fallthru
        _
    $region6: #{tpu_custom_call.1} parent=1 // loop_footer
      %s30 = sadd.s32 1, %s26
    $region7: #{tpu_custom_call.1} parent=1 // loop_footer_branch
      %25 = sbr.rel target = $region3
    $region8: #{tpu_custom_call.1} parent=1 // loop_exit
      _
    %370 = vsyncpa [#allocation7], 1
    %s371 = scalar_lea.sflag [#allocation7], 1
    %372 = vsyncpa %s371, 1
    %373 = vsyncpa [#allocation8], 1
    %s374 = scalar_lea.sflag [#allocation8], 1
    %375 = vsyncpa %s374, 1

</llo_original>
